<compile_context>
chip_gen: v7x
topology: tpu7x:2x2x1
jax: 0.10.0
libtpu: 0.0.40
codegen_flags: <defaults>
</compile_context>

<pallas_src>
import functools

import jax
import jax.numpy as jnp
from jax.experimental import pallas as pl
from jax.experimental.pallas import tpu as pltpu


_LRELU_SLOPE = 0.1        # module constructs nn.LeakyReLU(0.1)


def _lrelu(v):
    return jnp.where(v >= 0, v, _LRELU_SLOPE * v)


def _fwd_kernel(x_ref, h_ref,
                w_emb_ref, b_emb_ref,
                w_joint_ref, b_joint_ref,
                w_rnn_x_ref, w_rnn_h_ref, b_rnn_ref,
                w_num_ref,
                out_ref,
                *, hidden_size: int, map_pad: int, out_pad: int):
    H = hidden_size
    x = x_ref[...]                                           # (TB, xy+pix) f32
    h = h_ref[...]                                           # (TB, H)      f32

    # Fused xy/pix embeddings (block-diagonal weight) + LeakyReLU.
    # emb == cat(LReLU(xy_embedding(xy)), LReLU(pix_embedding(pix))) -- no concat needed.
    emb = _lrelu(jnp.dot(x, w_emb_ref[...], preferred_element_type=jnp.float32)
                 + b_emb_ref[...])                           # (TB, H)

    # joint_embedding + LeakyReLU (emb already is the concatenated vector).
    xr = _lrelu(jnp.dot(emb, w_joint_ref[...], preferred_element_type=jnp.float32)
                + b_joint_ref[...])                          # (TB, H)

    # One wide fused matmul: columns = [i2h (H) | i2o (H) | i2o @ map_readout (map_pad)].
    # cat(input, hidden) is eliminated by splitting weight rows into x-part and h-part.
    rnn = (jnp.dot(xr, w_rnn_x_ref[...], preferred_element_type=jnp.float32)
           + jnp.dot(h, w_rnn_h_ref[...], preferred_element_type=jnp.float32)
           + b_rnn_ref[...])                                 # (TB, 2H + map_pad)

    map_ = rnn[:, 2 * H:]                                    # padded columns are exactly 0
    penult = _lrelu(map_)                                    # sig=False, par=False, detach=False
    num = jnp.dot(penult, w_num_ref[...],
                  preferred_element_type=jnp.float32)        # (TB, out_pad), bias=False

    # Single lane-dense output slab: [emb | h_new | x_rnn | map_ | penult | num].
    # Every store is a full-width, 128-lane-aligned (unmasked) store.
    out_ref[:, 0:H] = emb
    out_ref[:, H:3 * H + map_pad] = rnn
    out_ref[:, 3 * H + map_pad:3 * H + 2 * map_pad] = penult
    out_ref[:, 3 * H + 2 * map_pad:3 * H + 2 * map_pad + out_pad] = num


def rnn_classifier2stream_forward(x, hidden, params, *, xy_size=2, batch_tile=None):
    """Forward pass.  `params` holds PyTorch-layout weights: Linear.weight is
    (out_features, in_features), so y = x @ W.T + b.

    batch_tile=None -> single grid iteration over the whole (padded) batch, which is
    optimal on single-TC chips (v5e/v6e) for this overhead-bound kernel.  Pass
    batch_tile=B//2 to split across both TensorCores on v7x if profiling shows it pays.
    """
    f32 = jnp.float32
    hi = jax.lax.Precision.HIGHEST
    H = hidden.shape[-1]
    half = H // 2

    w_xy = params['xy_embedding.weight']        # (H/2, xy)
    w_px = params['pix_embedding.weight']       # (H/2, pix)
    xy_in, pix_in = w_xy.shape[1], w_px.shape[1]
    feat = xy_in + pix_in
    assert x.shape[-1] == feat and xy_in == xy_size

    # --- weight prep (all f32; products via HIGHEST precision) ------------------------
    # Block-diagonal fusion of the two input embeddings: (xy+pix, H).
    w_emb = jnp.zeros((feat, H), f32)
    w_emb = w_emb.at[:xy_in, :half].set(w_xy.T.astype(f32))
    w_emb = w_emb.at[xy_in:, half:].set(w_px.T.astype(f32))
    b_emb = jnp.concatenate([params['xy_embedding.bias'],
                             params['pix_embedding.bias']]).astype(f32)

    w_joint = params['joint_embedding.weight'].T.astype(f32)            # (H, H)
    b_joint = params['joint_embedding.bias'].astype(f32)

    w_i2h = params['rnn.i2h.weight'].T.astype(f32)                      # (2H, H)
    w_i2o = params['rnn.i2o.weight'].T.astype(f32)                      # (2H, H)
    b_i2h = params['rnn.i2h.bias'].astype(f32)
    b_i2o = params['rnn.i2o.bias'].astype(f32)
    w_map = params['map_readout.weight'].T.astype(f32)                  # (H, map)
    b_map = params['map_readout.bias'].astype(f32)
    w_num = params['num_readout.weight'].T.astype(f32)                  # (map, out)

    map_sz, out_sz = w_map.shape[1], w_num.shape[1]
    map_pad = -(-map_sz // 128) * 128
    out_pad = -(-out_sz // 128) * 128

    def pad_cols(a, width):
        return jnp.pad(a, ((0, 0), (0, width - a.shape[1])))

    # Fold map_readout into the RNN matmul:
    #   map_ = xr @ (Wx_i2o @ Wmap) + h @ (Wh_i2o @ Wmap) + (b_i2o @ Wmap + b_map)
    wx_map = pad_cols(jnp.dot(w_i2o[:H], w_map, precision=hi), map_pad)
    wh_map = pad_cols(jnp.dot(w_i2o[H:], w_map, precision=hi), map_pad)
    b_fold = jnp.pad(jnp.dot(b_i2o, w_map, precision=hi) + b_map, (0, map_pad - map_sz))

    w_rnn_x = jnp.concatenate([w_i2h[:H], w_i2o[:H], wx_map], axis=1)   # (H, 2H+map_pad)
    w_rnn_h = jnp.concatenate([w_i2h[H:], w_i2o[H:], wh_map], axis=1)   # (H, 2H+map_pad)
    b_rnn = jnp.concatenate([b_i2h, b_i2o, b_fold])                     # (2H+map_pad,)

    w_num_p = jnp.pad(w_num, ((0, map_pad - map_sz), (0, out_pad - out_sz)))  # (map_pad, out_pad)

    b_emb, b_joint, b_rnn = (b.reshape(1, -1) for b in (b_emb, b_joint, b_rnn))

    # --- batch padding / grid ----------------------------------------------------------
    B = x.shape[0]
    x = x.astype(f32)
    hidden = hidden.astype(f32)
    if batch_tile is None:
        batch_tile = -(-B // 8) * 8                 # one grid step over the whole batch
    B_pad = -(-B // batch_tile) * batch_tile
    if B_pad != B:
        x = jnp.pad(x, ((0, B_pad - B), (0, 0)))
        hidden = jnp.pad(hidden, ((0, B_pad - B), (0, 0)))
    n_tiles = B_pad // batch_tile

    slab_w = 3 * H + 2 * map_pad + out_pad          # lane-dense packed output width

    def row_spec(width):
        return pl.BlockSpec((batch_tile, width), lambda i: (i, 0))

    def resident_spec(arr):
        # Constant block index across the batch grid -> fetched once, stays in VMEM.
        return pl.BlockSpec(arr.shape, lambda i: (0, 0))

    weights = (w_emb, b_emb, w_joint, b_joint, w_rnn_x, w_rnn_h, b_rnn, w_num_p)

    flops = 2 * B_pad * (feat * H + H * H + 2 * H * (2 * H + map_pad) + map_pad * out_pad)
    bytes_acc = 4 * (x.size + hidden.size + sum(int(w.size) for w in weights)
                     + B_pad * slab_w)

    slab = pl.pallas_call(
        functools.partial(_fwd_kernel, hidden_size=H, map_pad=map_pad, out_pad=out_pad),
        grid=(n_tiles,),
        in_specs=[row_spec(feat), row_spec(H)] + [resident_spec(w) for w in weights],
        out_specs=row_spec(slab_w),
        out_shape=jax.ShapeDtypeStruct((B_pad, slab_w), f32),
        compiler_params=pltpu.CompilerParams(
            dimension_semantics=("parallel",)),      # batch tiles -> both TCs on v7x
        cost_estimate=pl.CostEstimate(flops=flops, transcendentals=0,
                                      bytes_accessed=bytes_acc),
    )(x, hidden, *weights)

    # --- wrapper-side slicing of the packed slab (pure layout plumbing) ----------------
    emb = slab[:B, 0:H]
    h_new = slab[:B, H:2 * H]
    x_rnn = slab[:B, 2 * H:3 * H]
    map_ = slab[:B, 3 * H:3 * H + map_sz]
    penult = slab[:B, 3 * H + map_pad:3 * H + map_pad + map_sz]
    num = slab[:B, 3 * H + 2 * map_pad:3 * H + 2 * map_pad + out_sz]
    pix = emb[:, half:]
    return num, pix, map_, h_new, x_rnn, penult


def _reference_forward(x, hidden, p, *, xy_size=2):
    """Pure-JAX float32 reference mirroring the PyTorch module line by line."""
    xy = x[:, :xy_size]
    pix_in = x[:, xy_size:]
    xy_e = _lrelu(xy @ p['xy_embedding.weight'].T + p['xy_embedding.bias'])
    pix_e = _lrelu(pix_in @ p['pix_embedding.weight'].T + p['pix_embedding.bias'])
    combined = jnp.concatenate([xy_e, pix_e], axis=-1)
    xr = _lrelu(combined @ p['joint_embedding.weight'].T + p['joint_embedding.bias'])
    comb2 = jnp.concatenate([xr, hidden], axis=-1)
    h_new = comb2 @ p['rnn.i2h.weight'].T + p['rnn.i2h.bias']
    x_rnn = comb2 @ p['rnn.i2o.weight'].T + p['rnn.i2o.bias']
    map_ = x_rnn @ p['map_readout.weight'].T + p['map_readout.bias']
    penult = _lrelu(map_)
    num = penult @ p['num_readout.weight'].T
    return num, pix_e, map_, h_new, x_rnn, penult


def _init_params(key, *, xy_size, pix_size, hidden_size, map_size, output_size):
    """PyTorch nn.Linear default init: U(-1/sqrt(fan_in), 1/sqrt(fan_in))."""
    H = hidden_size
    specs = {
        'xy_embedding': (H // 2, xy_size, True),
        'pix_embedding': (H // 2, pix_size, True),
        'joint_embedding': (H, H, True),
        'rnn.i2h': (H, 2 * H, True),
        'rnn.i2o': (H, 2 * H, True),
        'map_readout': (map_size, H, True),
        'num_readout': (output_size, map_size, False),
    }
    params = {}
    for name, (out_f, in_f, has_bias) in specs.items():
        key, kw, kb = jax.random.split(key, 3)
        k = 1.0 / (in_f ** 0.5)
        params[f'{name}.weight'] = jax.random.uniform(kw, (out_f, in_f), jnp.float32, -k, k)
        if has_bias:
            params[f'{name}.bias'] = jax.random.uniform(kb, (out_f,), jnp.float32, -k, k)
    return params


if __name__ == "__main__":
    xy_size, pix_size = 2, 30
    hidden_size, map_size, output_size = 128, 36, 8
    batch = 64

    root = jax.random.PRNGKey(0)
    kp, kx, kh = jax.random.split(root, 3)
    params = _init_params(kp, xy_size=xy_size, pix_size=pix_size,
                          hidden_size=hidden_size, map_size=map_size,
                          output_size=output_size)
    x = jax.random.normal(kx, (batch, xy_size + pix_size), jnp.float32)
    hidden0 = 0.5 * jax.random.normal(kh, (batch, hidden_size), jnp.float32)

    fwd = jax.jit(functools.partial(rnn_classifier2stream_forward, xy_size=xy_size))
    outs = jax.block_until_ready(fwd(x, hidden0, params))

    refs = _reference_forward(x, hidden0, params, xy_size=xy_size)
    names = ('num', 'pix', 'map', 'hidden', 'x', 'penult')
    for name, got, ref in zip(names, outs, refs):
        assert got.shape == ref.shape, (name, got.shape, ref.shape)
        err = float(jnp.max(jnp.abs(got - ref)))
        # f32 weights + MXU accumulation vs f32 reference; folded map_readout adds only
        # reassociation error -> tolerance much tighter than the old bf16 version.
        assert err < 5e-2, f"{name}: max abs err {err}"

    print("KERNEL_OK")
</pallas_src>

<mosaic_0001>
module attributes {stable_mosaic.version = 11 : i64} {
  func.func @_fwd_kernel(%arg0: i32, %arg1: memref<64x32xf32, #tpu.memory_space<vmem>>, %arg2: memref<64x128xf32, #tpu.memory_space<vmem>>, %arg3: memref<32x128xf32, #tpu.memory_space<vmem>>, %arg4: memref<1x128xf32, #tpu.memory_space<vmem>>, %arg5: memref<128x128xf32, #tpu.memory_space<vmem>>, %arg6: memref<1x128xf32, #tpu.memory_space<vmem>>, %arg7: memref<128x384xf32, #tpu.memory_space<vmem>>, %arg8: memref<128x384xf32, #tpu.memory_space<vmem>>, %arg9: memref<1x384xf32, #tpu.memory_space<vmem>>, %arg10: memref<128x128xf32, #tpu.memory_space<vmem>>, %arg11: memref<64x768xf32, #tpu.memory_space<vmem>>) attributes {dimension_semantics = [#tpu.dimension_semantics<parallel>], iteration_bounds = array<i64: 1>, scalar_prefetch = 0 : i64, scratch_operands = 0 : i64, tpu.core_type = #tpu.core_type<tc>, window_params = [{transform_indices = @transform_0, window_bounds = array<i64: 64, 32>}, {transform_indices = @transform_1, window_bounds = array<i64: 64, 128>}, {pipeline_mode = #tpu.pipeline_mode<synchronous>, transform_indices = @transform_2, window_bounds = array<i64: 32, 128>}, {pipeline_mode = #tpu.pipeline_mode<synchronous>, transform_indices = @transform_3, window_bounds = array<i64: 1, 128>}, {pipeline_mode = #tpu.pipeline_mode<synchronous>, transform_indices = @transform_4, window_bounds = array<i64: 128, 128>}, {pipeline_mode = #tpu.pipeline_mode<synchronous>, transform_indices = @transform_5, window_bounds = array<i64: 1, 128>}, {pipeline_mode = #tpu.pipeline_mode<synchronous>, transform_indices = @transform_6, window_bounds = array<i64: 128, 384>}, {pipeline_mode = #tpu.pipeline_mode<synchronous>, transform_indices = @transform_7, window_bounds = array<i64: 128, 384>}, {pipeline_mode = #tpu.pipeline_mode<synchronous>, transform_indices = @transform_8, window_bounds = array<i64: 1, 384>}, {pipeline_mode = #tpu.pipeline_mode<synchronous>, transform_indices = @transform_9, window_bounds = array<i64: 128, 128>}, {transform_indices = @transform_10, window_bounds = array<i64: 64, 768>}]} {
    %c0 = arith.constant 0 : index
    %c0_0 = arith.constant 0 : index
    %0 = vector.load %arg1[%c0, %c0_0] : memref<64x32xf32, #tpu.memory_space<vmem>>, vector<64x32xf32>
    %c0_1 = arith.constant 0 : index
    %c0_2 = arith.constant 0 : index
    %1 = vector.load %arg2[%c0_1, %c0_2] : memref<64x128xf32, #tpu.memory_space<vmem>>, vector<64x128xf32>
    %c0_3 = arith.constant 0 : index
    %c0_4 = arith.constant 0 : index
    %2 = vector.load %arg3[%c0_3, %c0_4] : memref<32x128xf32, #tpu.memory_space<vmem>>, vector<32x128xf32>
    %cst = arith.constant dense<0.000000e+00> : vector<64x128xf32>
    %3 = tpu.matmul %0, %2, %cst {dimension_numbers = #tpu.dot_dimension_numbers<[1], [0], [0], [1], [0, 0, 1, 1], [], []>} : vector<64x32xf32>, vector<32x128xf32>, vector<64x128xf32> -> vector<64x128xf32>
    %c0_5 = arith.constant 0 : index
    %c0_6 = arith.constant 0 : index
    %4 = vector.load %arg4[%c0_5, %c0_6] : memref<1x128xf32, #tpu.memory_space<vmem>>, vector<1x128xf32>
    %5 = vector.broadcast %4 : vector<1x128xf32> to vector<64x128xf32>
    %6 = arith.addf %3, %5 : vector<64x128xf32>
    %cst_7 = arith.constant 0.000000e+00 : f32
    %7 = vector.broadcast %cst_7 : f32 to vector<64x128xf32>
    %8 = arith.cmpf oge, %6, %7 : vector<64x128xf32>
    %cst_8 = arith.constant 1.000000e-01 : f32
    %9 = vector.broadcast %cst_8 : f32 to vector<64x128xf32>
    %10 = arith.mulf %9, %6 : vector<64x128xf32>
    %11 = arith.select %8, %6, %10 : vector<64x128xi1>, vector<64x128xf32>
    %c0_9 = arith.constant 0 : index
    %c0_10 = arith.constant 0 : index
    %12 = vector.load %arg5[%c0_9, %c0_10] : memref<128x128xf32, #tpu.memory_space<vmem>>, vector<128x128xf32>
    %cst_11 = arith.constant dense<0.000000e+00> : vector<64x128xf32>
    %13 = tpu.matmul %11, %12, %cst_11 {dimension_numbers = #tpu.dot_dimension_numbers<[1], [0], [0], [1], [0, 0, 1, 1], [], []>} : vector<64x128xf32>, vector<128x128xf32>, vector<64x128xf32> -> vector<64x128xf32>
    %c0_12 = arith.constant 0 : index
    %c0_13 = arith.constant 0 : index
    %14 = vector.load %arg6[%c0_12, %c0_13] : memref<1x128xf32, #tpu.memory_space<vmem>>, vector<1x128xf32>
    %15 = vector.broadcast %14 : vector<1x128xf32> to vector<64x128xf32>
    %16 = arith.addf %13, %15 : vector<64x128xf32>
    %cst_14 = arith.constant 0.000000e+00 : f32
    %17 = vector.broadcast %cst_14 : f32 to vector<64x128xf32>
    %18 = arith.cmpf oge, %16, %17 : vector<64x128xf32>
    %cst_15 = arith.constant 1.000000e-01 : f32
    %19 = vector.broadcast %cst_15 : f32 to vector<64x128xf32>
    %20 = arith.mulf %19, %16 : vector<64x128xf32>
    %21 = arith.select %18, %16, %20 : vector<64x128xi1>, vector<64x128xf32>
    %c0_16 = arith.constant 0 : index
    %c0_17 = arith.constant 0 : index
    %22 = vector.load %arg7[%c0_16, %c0_17] : memref<128x384xf32, #tpu.memory_space<vmem>>, vector<128x384xf32>
    %cst_18 = arith.constant dense<0.000000e+00> : vector<64x384xf32>
    %23 = tpu.matmul %21, %22, %cst_18 {dimension_numbers = #tpu.dot_dimension_numbers<[1], [0], [0], [1], [0, 0, 1, 1], [], []>} : vector<64x128xf32>, vector<128x384xf32>, vector<64x384xf32> -> vector<64x384xf32>
    %c0_19 = arith.constant 0 : index
    %c0_20 = arith.constant 0 : index
    %24 = vector.load %arg8[%c0_19, %c0_20] : memref<128x384xf32, #tpu.memory_space<vmem>>, vector<128x384xf32>
    %cst_21 = arith.constant dense<0.000000e+00> : vector<64x384xf32>
    %25 = tpu.matmul %1, %24, %cst_21 {dimension_numbers = #tpu.dot_dimension_numbers<[1], [0], [0], [1], [0, 0, 1, 1], [], []>} : vector<64x128xf32>, vector<128x384xf32>, vector<64x384xf32> -> vector<64x384xf32>
    %26 = arith.addf %23, %25 : vector<64x384xf32>
    %c0_22 = arith.constant 0 : index
    %c0_23 = arith.constant 0 : index
    %27 = vector.load %arg9[%c0_22, %c0_23] : memref<1x384xf32, #tpu.memory_space<vmem>>, vector<1x384xf32>
    %28 = vector.broadcast %27 : vector<1x384xf32> to vector<64x384xf32>
    %29 = arith.addf %26, %28 : vector<64x384xf32>
    %30 = vector.extract_strided_slice %29 {offsets = [0, 256], sizes = [64, 128], strides = [1, 1]} : vector<64x384xf32> to vector<64x128xf32>
    %cst_24 = arith.constant 0.000000e+00 : f32
    %31 = vector.broadcast %cst_24 : f32 to vector<64x128xf32>
    %32 = arith.cmpf oge, %30, %31 : vector<64x128xf32>
    %cst_25 = arith.constant 1.000000e-01 : f32
    %33 = vector.broadcast %cst_25 : f32 to vector<64x128xf32>
    %34 = arith.mulf %33, %30 : vector<64x128xf32>
    %35 = arith.select %32, %30, %34 : vector<64x128xi1>, vector<64x128xf32>
    %c0_26 = arith.constant 0 : index
    %c0_27 = arith.constant 0 : index
    %36 = vector.load %arg10[%c0_26, %c0_27] : memref<128x128xf32, #tpu.memory_space<vmem>>, vector<128x128xf32>
    %cst_28 = arith.constant dense<0.000000e+00> : vector<64x128xf32>
    %37 = tpu.matmul %35, %36, %cst_28 {dimension_numbers = #tpu.dot_dimension_numbers<[1], [0], [0], [1], [0, 0, 1, 1], [], []>} : vector<64x128xf32>, vector<128x128xf32>, vector<64x128xf32> -> vector<64x128xf32>
    %c0_29 = arith.constant 0 : index
    %c0_30 = arith.constant 0 : index
    %38 = vector.load %arg11[%c0_29, %c0_30] : memref<64x768xf32, #tpu.memory_space<vmem>>, vector<64x128xf32>
    tpu.vector_store %arg11[%c0_29, %c0_30], %11 {strides = array<i32>} : memref<64x768xf32, #tpu.memory_space<vmem>>, vector<64x128xf32>,
    %c0_31 = arith.constant 0 : index
    %c128 = arith.constant 128 : index
    %39 = vector.load %arg11[%c0_31, %c128] : memref<64x768xf32, #tpu.memory_space<vmem>>, vector<64x384xf32>
    tpu.vector_store %arg11[%c0_31, %c128], %29 {strides = array<i32>} : memref<64x768xf32, #tpu.memory_space<vmem>>, vector<64x384xf32>,
    %c0_32 = arith.constant 0 : index
    %c512 = arith.constant 512 : index
    %40 = vector.load %arg11[%c0_32, %c512] : memref<64x768xf32, #tpu.memory_space<vmem>>, vector<64x128xf32>
    tpu.vector_store %arg11[%c0_32, %c512], %35 {strides = array<i32>} : memref<64x768xf32, #tpu.memory_space<vmem>>, vector<64x128xf32>,
    %c0_33 = arith.constant 0 : index
    %c640 = arith.constant 640 : index
    %41 = vector.load %arg11[%c0_33, %c640] : memref<64x768xf32, #tpu.memory_space<vmem>>, vector<64x128xf32>
    tpu.vector_store %arg11[%c0_33, %c640], %37 {strides = array<i32>} : memref<64x768xf32, #tpu.memory_space<vmem>>, vector<64x128xf32>,
    return
  }
  func.func @transform_0(%arg0: i32) -> (i32, i32) {
    %c0_i32 = arith.constant 0 : i32
    %c0_i32_0 = arith.constant 0 : i32
    return %arg0, %c0_i32 : i32, i32
  }
  func.func @transform_1(%arg0: i32) -> (i32, i32) {
    %c0_i32 = arith.constant 0 : i32
    %c0_i32_0 = arith.constant 0 : i32
    return %arg0, %c0_i32 : i32, i32
  }
  func.func @transform_2(%arg0: i32) -> (i32, i32) {
    %c0_i32 = arith.constant 0 : i32
    %c0_i32_0 = arith.constant 0 : i32
    %c0_i32_1 = arith.constant 0 : i32
    return %c0_i32, %c0_i32_0 : i32, i32
  }
  func.func @transform_3(%arg0: i32) -> (i32, i32) {
    %c0_i32 = arith.constant 0 : i32
    %c0_i32_0 = arith.constant 0 : i32
    %c0_i32_1 = arith.constant 0 : i32
    return %c0_i32, %c0_i32_0 : i32, i32
  }
  func.func @transform_4(%arg0: i32) -> (i32, i32) {
    %c0_i32 = arith.constant 0 : i32
    %c0_i32_0 = arith.constant 0 : i32
    %c0_i32_1 = arith.constant 0 : i32
    return %c0_i32, %c0_i32_0 : i32, i32
  }
  func.func @transform_5(%arg0: i32) -> (i32, i32) {
    %c0_i32 = arith.constant 0 : i32
    %c0_i32_0 = arith.constant 0 : i32
    %c0_i32_1 = arith.constant 0 : i32
    return %c0_i32, %c0_i32_0 : i32, i32
  }
  func.func @transform_6(%arg0: i32) -> (i32, i32) {
    %c0_i32 = arith.constant 0 : i32
    %c0_i32_0 = arith.constant 0 : i32
    %c0_i32_1 = arith.constant 0 : i32
    return %c0_i32, %c0_i32_0 : i32, i32
  }
  func.func @transform_7(%arg0: i32) -> (i32, i32) {
    %c0_i32 = arith.constant 0 : i32
    %c0_i32_0 = arith.constant 0 : i32
    %c0_i32_1 = arith.constant 0 : i32
    return %c0_i32, %c0_i32_0 : i32, i32
  }
  func.func @transform_8(%arg0: i32) -> (i32, i32) {
    %c0_i32 = arith.constant 0 : i32
    %c0_i32_0 = arith.constant 0 : i32
    %c0_i32_1 = arith.constant 0 : i32
    return %c0_i32, %c0_i32_0 : i32, i32
  }
  func.func @transform_9(%arg0: i32) -> (i32, i32) {
    %c0_i32 = arith.constant 0 : i32
    %c0_i32_0 = arith.constant 0 : i32
    %c0_i32_1 = arith.constant 0 : i32
    return %c0_i32, %c0_i32_0 : i32, i32
  }
  func.func @transform_10(%arg0: i32) -> (i32, i32) {
    %c0_i32 = arith.constant 0 : i32
    %c0_i32_0 = arith.constant 0 : i32
    return %arg0, %c0_i32 : i32, i32
  }
}

</mosaic_0001>

<llo_original>
// kernel: rnn_classifier2stream_forward.1
$region0: #{rnn_classifier2stream_forward.1}
  #allocation0 [shape = 'u32[]', space=smem, size = 0x4, offset = 0x4, fixed_abs, tag = 'smem constant byte address 0x4 - core index']
  #allocation1 [shape = 'u32[144,128]{1,0:T(1,128)}', space=vmem, size = 0x12000, scoped, tag = 'internal scratch']
  %s0 = inlined_call_operand.vmem [shape: f32[64,32], index: 0, kind: input, shape index: {}]
  %s1 = inlined_call_operand.vmem [shape: f32[64,128], index: 1, kind: input, shape index: {}]
  %s2 = inlined_call_operand.vmem [shape: f32[32,128], index: 2, kind: input, shape index: {}]
  %s3 = inlined_call_operand.vmem [shape: f32[1,128], index: 3, kind: input, shape index: {}]
  %s4 = inlined_call_operand.vmem [shape: f32[128,128], index: 4, kind: input, shape index: {}]
  %s5 = inlined_call_operand.vmem [shape: f32[1,128], index: 5, kind: input, shape index: {}]
  %s6 = inlined_call_operand.vmem [shape: f32[128,384], index: 6, kind: input, shape index: {}]
  %s7 = inlined_call_operand.vmem [shape: f32[128,384], index: 7, kind: input, shape index: {}]
  %s8 = inlined_call_operand.vmem [shape: f32[1,384], index: 8, kind: input, shape index: {}]
  %s9 = inlined_call_operand.vmem [shape: f32[128,128], index: 9, kind: input, shape index: {}]
  %s10 = inlined_call_operand.vmem [shape: f32[64,768], index: 10, kind: output, shape index: {}]
  %s11 = sld [smem:[#allocation0]]
  $region50: #{rnn_classifier2stream_forward.1} parent=0
    _
  %s13 = ssub.s32 1, %s11
  %s14 = scalar_select 0, %s13, %s11
  // Predicated region
  $region2: #{rnn_classifier2stream_forward.1} parent=0 // pred_check
    _
  $region3: #{rnn_classifier2stream_forward.1} parent=0 // pred_check_branch
    %16 = sbr.rel (0) target = $region5
  $region4: #{rnn_classifier2stream_forward.1} parent=0 // pred_region
    _
  $region5: #{rnn_classifier2stream_forward.1} parent=0 // pred_fallthru
    _
  // Predicated region
  $region6: #{rnn_classifier2stream_forward.1} parent=0 // pred_check
    _
  $region7: #{rnn_classifier2stream_forward.1} parent=0 // pred_check_branch
    %18 = sbr.rel (0) target = $region9
  $region8: #{rnn_classifier2stream_forward.1} parent=0 // pred_region
    _
  $region9: #{rnn_classifier2stream_forward.1} parent=0 // pred_fallthru
    _
  // Predicated region
  $region10: #{rnn_classifier2stream_forward.1} parent=0 // pred_check
    _
  $region11: #{rnn_classifier2stream_forward.1} parent=0 // pred_check_branch
    %20 = sbr.rel (0) target = $region13
  $region12: #{rnn_classifier2stream_forward.1} parent=0 // pred_region
    _
  $region13: #{rnn_classifier2stream_forward.1} parent=0 // pred_fallthru
    _
  // Predicated region
  $region14: #{rnn_classifier2stream_forward.1} parent=0 // pred_check
    _
  $region15: #{rnn_classifier2stream_forward.1} parent=0 // pred_check_branch
    %22 = sbr.rel (0) target = $region17
  $region16: #{rnn_classifier2stream_forward.1} parent=0 // pred_region
    _
  $region17: #{rnn_classifier2stream_forward.1} parent=0 // pred_fallthru
    _
  // Predicated region
  $region18: #{rnn_classifier2stream_forward.1} parent=0 // pred_check
    _
  $region19: #{rnn_classifier2stream_forward.1} parent=0 // pred_check_branch
    %24 = sbr.rel (0) target = $region21
  $region20: #{rnn_classifier2stream_forward.1} parent=0 // pred_region
    _
  $region21: #{rnn_classifier2stream_forward.1} parent=0 // pred_fallthru
    _
  // Predicated region
  $region22: #{rnn_classifier2stream_forward.1} parent=0 // pred_check
    _
  $region23: #{rnn_classifier2stream_forward.1} parent=0 // pred_check_branch
    %26 = sbr.rel (0) target = $region25
  $region24: #{rnn_classifier2stream_forward.1} parent=0 // pred_region
    _
  $region25: #{rnn_classifier2stream_forward.1} parent=0 // pred_fallthru
    _
  // Predicated region
  $region26: #{rnn_classifier2stream_forward.1} parent=0 // pred_check
    _
  $region27: #{rnn_classifier2stream_forward.1} parent=0 // pred_check_branch
    %28 = sbr.rel (0) target = $region29
  $region28: #{rnn_classifier2stream_forward.1} parent=0 // pred_region
    _
  $region29: #{rnn_classifier2stream_forward.1} parent=0 // pred_fallthru
    _
  // Predicated region
  $region30: #{rnn_classifier2stream_forward.1} parent=0 // pred_check
    _
  $region31: #{rnn_classifier2stream_forward.1} parent=0 // pred_check_branch
    %30 = sbr.rel (0) target = $region33
  $region32: #{rnn_classifier2stream_forward.1} parent=0 // pred_region
    _
  $region33: #{rnn_classifier2stream_forward.1} parent=0 // pred_fallthru
    _
  // Predicated region
  $region34: #{rnn_classifier2stream_forward.1} parent=0 // pred_check
    _
  $region35: #{rnn_classifier2stream_forward.1} parent=0 // pred_check_branch
    %32 = sbr.rel (0) target = $region37
  $region36: #{rnn_classifier2stream_forward.1} parent=0 // pred_region
    _
  $region37: #{rnn_classifier2stream_forward.1} parent=0 // pred_fallthru
    _
  // Predicated region
  $region38: #{rnn_classifier2stream_forward.1} parent=0 // pred_check
    _
  $region39: #{rnn_classifier2stream_forward.1} parent=0 // pred_check_branch
    %34 = sbr.rel (0) target = $region41
  $region40: #{rnn_classifier2stream_forward.1} parent=0 // pred_region
    _
  $region41: #{rnn_classifier2stream_forward.1} parent=0 // pred_fallthru
    _
  %v35 = vld [vmem:[%s0] sm:$0xff]
  %v36 = vld [vmem:[%s0 + $0x8] sm:$0xff]
  %v37 = vld [vmem:[%s0 + $0x10] sm:$0xff]
  %v38 = vld [vmem:[%s0 + $0x18] sm:$0xff]
  %v39 = vld [vmem:[%s0 + $0x20] sm:$0xff]
  %v40 = vld [vmem:[%s0 + $0x28] sm:$0xff]
  %v41 = vld [vmem:[%s0 + $0x30] sm:$0xff]
  %v42 = vld [vmem:[%s0 + $0x38] sm:$0xff]
  %v43 = vld [vmem:[%s1] sm:$0xff]
  %v44 = vld [vmem:[%s1 + $0x8] sm:$0xff]
  %v45 = vld [vmem:[%s1 + $0x10] sm:$0xff]
  %v46 = vld [vmem:[%s1 + $0x18] sm:$0xff]
  %v47 = vld [vmem:[%s1 + $0x20] sm:$0xff]
  %v48 = vld [vmem:[%s1 + $0x28] sm:$0xff]
  %v49 = vld [vmem:[%s1 + $0x30] sm:$0xff]
  %v50 = vld [vmem:[%s1 + $0x38] sm:$0xff]
  %v51 = vld [vmem:[%s2] sm:$0xff]
  %v52 = vld [vmem:[%s2 + $0x8] sm:$0xff]
  %v53 = vld [vmem:[%s2 + $0x10] sm:$0xff]
  %v54 = vld [vmem:[%s2 + $0x18] sm:$0xff]
  %v55 = vld [vmem:[%s3] sm:$0x1]
  %v57 = vlaneseq
  %v58 = vshrl.u32 %v57, 7
  %v59 = vsub.s32 0, %v58
  %v60 = vrot.slane %v55, %v59
  %vm62 = vcmask 261120
  %v64 = vsel %vm62, %v35, 0
  %v67 = vsel %vm62, %v36, 0
  %v70 = vsel %vm62, %v37, 0
  %v73 = vsel %vm62, %v38, 0
  %v76 = vsel %vm62, %v39, 0
  %v79 = vsel %vm62, %v40, 0
  %v82 = vsel %vm62, %v41, 0
  %v85 = vsel %vm62, %v42, 0
  %87 = vmatprep.subr.mxu0 0.0
  %88 = vmatpush1.msra.mxu0 %v51
  %89 = vmatprep.subr.mxu0 0.0
  %90 = vmatpush1.msra.mxu0 %v52
  %91 = vmatprep.subr.mxu0 0.0
  %92 = vmatpush1.msra.mxu0 %v53
  %93 = vmatprep.subr.mxu0 0.0
  %94 = vmatpush1.msra.mxu0 %v54
  %95 = vmatprep.subr.mxu0 0.0
  %96 = vmatpush1.msra.mxu0 0.0
  %97 = vmatprep.subr.mxu0 0.0
  %98 = vmatpush1.msra.mxu0 0.0
  %99 = vmatprep.subr.mxu0 0.0
  %100 = vmatpush1.msra.mxu0 0.0
  %101 = vmatprep.subr.mxu0 0.0
  %102 = vmatpush1.msra.mxu0 0.0
  %103 = vmatprep.subr.mxu0 0.0
  %104 = vmatpush1.msra.mxu0 0.0
  %105 = vmatprep.subr.mxu0 0.0
  %106 = vmatpush1.msra.mxu0 0.0
  %107 = vmatprep.subr.mxu0 0.0
  %108 = vmatpush1.msra.mxu0 0.0
  %109 = vmatprep.subr.mxu0 0.0
  %110 = vmatpush1.msra.mxu0 0.0
  %111 = vmatprep.subr.mxu0 0.0
  %112 = vmatpush1.msra.mxu0 0.0
  %113 = vmatprep.subr.mxu0 0.0
  %114 = vmatpush1.msra.mxu0 0.0
  %115 = vmatprep.subr.mxu0 0.0
  %116 = vmatpush1.msra.mxu0 0.0
  %117 = vmatprep.subr.mxu0 0.0
  %118 = vmatpush1.msra.mxu0 0.0
  %119 = vmatprep.subr.mxu0 0.0
  %120 = vmatpush1.msra.mxu0 0.0
  %121 = vmatprep.subr.mxu0 0.0
  %122 = vmatpush1.msra.mxu0 0.0
  %123 = vmatprep.subr.mxu0 0.0
  %124 = vmatpush1.msra.mxu0 0.0
  %125 = vmatprep.subr.mxu0 0.0
  %126 = vmatpush1.msra.mxu0 0.0
  %127 = vmatprep.subr.mxu0 0.0
  %128 = vmatpush1.msra.mxu0 0.0
  %129 = vmatprep.subr.mxu0 0.0
  %130 = vmatpush1.msra.mxu0 0.0
  %131 = vmatprep.subr.mxu0 0.0
  %132 = vmatpush1.msra.mxu0 0.0
  %133 = vmatprep.subr.mxu0 0.0
  %134 = vmatpush1.msra.mxu0 0.0
  %135 = vmatprep.subr.mxu0 0.0
  %136 = vmatpush1.msra.mxu0 0.0
  %137 = vmatprep.subr.mxu0 0.0
  %138 = vmatpush1.msra.mxu0 0.0
  %139 = vmatprep.subr.mxu0 0.0
  %140 = vmatpush1.msra.mxu0 0.0
  %141 = vmatprep.subr.mxu0 0.0
  %142 = vmatpush1.msra.mxu0 0.0
  %143 = vmatprep.subr.mxu0 0.0
  %144 = vmatpush1.msra.mxu0 0.0
  %145 = vmatprep.subr.mxu0 0.0
  %146 = vmatpush1.msra.mxu0 0.0
  %147 = vmatprep.subr.mxu0 0.0
  %148 = vmatpush1.msra.mxu0 0.0
  %149 = vmatprep.subr.mxu0 0.0
  %150 = vmatpush1.msra.mxu0 0.0
  %151 = vmatprep.mubr.f32.mxu0 0.0
  %152 = vmatmul.mubr.f32.gmra.mrb[0].mxu0 %v64
  %v153 = vpop.f32.mrb[0].mxu0
  %v154 = vadd.f32 %v60, %v153
  %v155 = vpop.f32.mrb[0].mxu0
  %156 = vmatprep.mubr.f32.mxu0 0.0
  %157 = vmatmul.mubr.f32.gmra.mrb[0].mxu0 %v67
  %v158 = vpop.f32.mrb[0].mxu0
  %v159 = vadd.f32 %v60, %v158
  %v160 = vpop.f32.mrb[0].mxu0
  %161 = vmatprep.mubr.f32.mxu0 0.0
  %162 = vmatmul.mubr.f32.gmra.mrb[0].mxu0 %v70
  %v163 = vpop.f32.mrb[0].mxu0
  %v164 = vadd.f32 %v60, %v163
  %v165 = vpop.f32.mrb[0].mxu0
  %166 = vmatprep.mubr.f32.mxu0 0.0
  %167 = vmatmul.mubr.f32.gmra.mrb[0].mxu0 %v73
  %v168 = vpop.f32.mrb[0].mxu0
  %v169 = vadd.f32 %v60, %v168
  %v170 = vpop.f32.mrb[0].mxu0
  %171 = vmatprep.mubr.f32.mxu0 0.0
  %172 = vmatmul.mubr.f32.gmra.mrb[0].mxu0 %v76
  %v173 = vpop.f32.mrb[0].mxu0
  %v174 = vadd.f32 %v60, %v173
  %v175 = vpop.f32.mrb[0].mxu0
  %176 = vmatprep.mubr.f32.mxu0 0.0
  %177 = vmatmul.mubr.f32.gmra.mrb[0].mxu0 %v79
  %v178 = vpop.f32.mrb[0].mxu0
  %v179 = vadd.f32 %v60, %v178
  %v180 = vpop.f32.mrb[0].mxu0
  %181 = vmatprep.mubr.f32.mxu0 0.0
  %182 = vmatmul.mubr.f32.gmra.mrb[0].mxu0 %v82
  %v183 = vpop.f32.mrb[0].mxu0
  %v184 = vadd.f32 %v60, %v183
  %v185 = vpop.f32.mrb[0].mxu0
  %186 = vmatprep.mubr.f32.mxu0 0.0
  %187 = vmatmul.mubr.f32.gmra.mrb[0].mxu0 %v85
  %v188 = vpop.f32.mrb[0].mxu0
  %v189 = vadd.f32 %v60, %v188
  %v190 = vpop.f32.mrb[0].mxu0
  %191 = vdwg.mxu0
  %vm192 = vcmp.ge.f32.partialorder %v154, 0.0
  %vm193 = vcmp.ge.f32.partialorder %v159, 0.0
  %vm194 = vcmp.ge.f32.partialorder %v164, 0.0
  %vm195 = vcmp.ge.f32.partialorder %v169, 0.0
  %vm196 = vcmp.ge.f32.partialorder %v174, 0.0
  %vm197 = vcmp.ge.f32.partialorder %v179, 0.0
  %vm198 = vcmp.ge.f32.partialorder %v184, 0.0
  %vm199 = vcmp.ge.f32.partialorder %v189, 0.0
  %v200 = vmul.f32 %v154, 0.1
  %v201 = vmul.f32 %v159, 0.1
  %v202 = vmul.f32 %v164, 0.1
  %v203 = vmul.f32 %v169, 0.1
  %v204 = vmul.f32 %v174, 0.1
  %v205 = vmul.f32 %v179, 0.1
  %v206 = vmul.f32 %v184, 0.1
  %v207 = vmul.f32 %v189, 0.1
  %v208 = vsel %vm192, %v154, %v200
  %v209 = vsel %vm193, %v159, %v201
  %v210 = vsel %vm194, %v164, %v202
  %v211 = vsel %vm195, %v169, %v203
  %v212 = vsel %vm196, %v174, %v204
  %v213 = vsel %vm197, %v179, %v205
  %v214 = vsel %vm198, %v184, %v206
  %v215 = vsel %vm199, %v189, %v207
  %v216 = vld [vmem:[%s4] sm:$0xff]
  %v217 = vld [vmem:[%s4 + $0x8] sm:$0xff]
  %v218 = vld [vmem:[%s4 + $0x10] sm:$0xff]
  %v219 = vld [vmem:[%s4 + $0x18] sm:$0xff]
  %v220 = vld [vmem:[%s4 + $0x20] sm:$0xff]
  %v221 = vld [vmem:[%s4 + $0x28] sm:$0xff]
  %v222 = vld [vmem:[%s4 + $0x30] sm:$0xff]
  %v223 = vld [vmem:[%s4 + $0x38] sm:$0xff]
  %v224 = vld [vmem:[%s4 + $0x40] sm:$0xff]
  %v225 = vld [vmem:[%s4 + $0x48] sm:$0xff]
  %v226 = vld [vmem:[%s4 + $0x50] sm:$0xff]
  %v227 = vld [vmem:[%s4 + $0x58] sm:$0xff]
  %v228 = vld [vmem:[%s4 + $0x60] sm:$0xff]
  %v229 = vld [vmem:[%s4 + $0x68] sm:$0xff]
  %v230 = vld [vmem:[%s4 + $0x70] sm:$0xff]
  %v231 = vld [vmem:[%s4 + $0x78] sm:$0xff]
  %v232 = vld [vmem:[%s5] sm:$0x1]
  %v234 = vlaneseq
  %v235 = vshrl.u32 %v234, 7
  %v236 = vsub.s32 0, %v235
  %v237 = vrot.slane %v232, %v236
  %239 = vmatprep.subr.mxu0 0.0
  %240 = vmatpush1.msra.mxu0 %v216
  %241 = vmatprep.subr.mxu0 0.0
  %242 = vmatpush1.msra.mxu0 %v217
  %243 = vmatprep.subr.mxu0 0.0
  %244 = vmatpush1.msra.mxu0 %v218
  %245 = vmatprep.subr.mxu0 0.0
  %246 = vmatpush1.msra.mxu0 %v219
  %247 = vmatprep.subr.mxu0 0.0
  %248 = vmatpush1.msra.mxu0 %v220
  %249 = vmatprep.subr.mxu0 0.0
  %250 = vmatpush1.msra.mxu0 %v221
  %251 = vmatprep.subr.mxu0 0.0
  %252 = vmatpush1.msra.mxu0 %v222
  %253 = vmatprep.subr.mxu0 0.0
  %254 = vmatpush1.msra.mxu0 %v223
  %255 = vmatprep.subr.mxu0 0.0
  %256 = vmatpush1.msra.mxu0 %v224
  %257 = vmatprep.subr.mxu0 0.0
  %258 = vmatpush1.msra.mxu0 %v225
  %259 = vmatprep.subr.mxu0 0.0
  %260 = vmatpush1.msra.mxu0 %v226
  %261 = vmatprep.subr.mxu0 0.0
  %262 = vmatpush1.msra.mxu0 %v227
  %263 = vmatprep.subr.mxu0 0.0
  %264 = vmatpush1.msra.mxu0 %v228
  %265 = vmatprep.subr.mxu0 0.0
  %266 = vmatpush1.msra.mxu0 %v229
  %267 = vmatprep.subr.mxu0 0.0
  %268 = vmatpush1.msra.mxu0 %v230
  %269 = vmatprep.subr.mxu0 0.0
  %270 = vmatpush1.msra.mxu0 %v231
  %271 = vmatprep.subr.mxu0 0.0
  %272 = vmatpush1.msra.mxu0 0.0
  %273 = vmatprep.subr.mxu0 0.0
  %274 = vmatpush1.msra.mxu0 0.0
  %275 = vmatprep.subr.mxu0 0.0
  %276 = vmatpush1.msra.mxu0 0.0
  %277 = vmatprep.subr.mxu0 0.0
  %278 = vmatpush1.msra.mxu0 0.0
  %279 = vmatprep.subr.mxu0 0.0
  %280 = vmatpush1.msra.mxu0 0.0
  %281 = vmatprep.subr.mxu0 0.0
  %282 = vmatpush1.msra.mxu0 0.0
  %283 = vmatprep.subr.mxu0 0.0
  %284 = vmatpush1.msra.mxu0 0.0
  %285 = vmatprep.subr.mxu0 0.0
  %286 = vmatpush1.msra.mxu0 0.0
  %287 = vmatprep.subr.mxu0 0.0
  %288 = vmatpush1.msra.mxu0 0.0
  %289 = vmatprep.subr.mxu0 0.0
  %290 = vmatpush1.msra.mxu0 0.0
  %291 = vmatprep.subr.mxu0 0.0
  %292 = vmatpush1.msra.mxu0 0.0
  %293 = vmatprep.subr.mxu0 0.0
  %294 = vmatpush1.msra.mxu0 0.0
  %295 = vmatprep.subr.mxu0 0.0
  %296 = vmatpush1.msra.mxu0 0.0
  %297 = vmatprep.subr.mxu0 0.0
  %298 = vmatpush1.msra.mxu0 0.0
  %299 = vmatprep.subr.mxu0 0.0
  %300 = vmatpush1.msra.mxu0 0.0
  %301 = vmatprep.subr.mxu0 0.0
  %302 = vmatpush1.msra.mxu0 0.0
  %303 = vmatprep.mubr.f32.mxu0 0.0
  %304 = vmatmul.mubr.f32.gmra.mrb[0].mxu0 %v208
  %v305 = vpop.f32.mrb[0].mxu0
  %v306 = vadd.f32 %v237, %v305
  %v307 = vpop.f32.mrb[0].mxu0
  %308 = vmatprep.mubr.f32.mxu0 0.0
  %309 = vmatmul.mubr.f32.gmra.mrb[0].mxu0 %v209
  %v310 = vpop.f32.mrb[0].mxu0
  %v311 = vadd.f32 %v237, %v310
  %v312 = vpop.f32.mrb[0].mxu0
  %313 = vmatprep.mubr.f32.mxu0 0.0
  %314 = vmatmul.mubr.f32.gmra.mrb[0].mxu0 %v210
  %v315 = vpop.f32.mrb[0].mxu0
  %v316 = vadd.f32 %v237, %v315
  %v317 = vpop.f32.mrb[0].mxu0
  %318 = vmatprep.mubr.f32.mxu0 0.0
  %319 = vmatmul.mubr.f32.gmra.mrb[0].mxu0 %v211
  %v320 = vpop.f32.mrb[0].mxu0
  %v321 = vadd.f32 %v237, %v320
  %v322 = vpop.f32.mrb[0].mxu0
  %323 = vmatprep.mubr.f32.mxu0 0.0
  %324 = vmatmul.mubr.f32.gmra.mrb[0].mxu0 %v212
  %v325 = vpop.f32.mrb[0].mxu0
  %v326 = vadd.f32 %v237, %v325
  %v327 = vpop.f32.mrb[0].mxu0
  %328 = vmatprep.mubr.f32.mxu0 0.0
  %329 = vmatmul.mubr.f32.gmra.mrb[0].mxu0 %v213
  %v330 = vpop.f32.mrb[0].mxu0
  %v331 = vadd.f32 %v237, %v330
  %v332 = vpop.f32.mrb[0].mxu0
  %333 = vmatprep.mubr.f32.mxu0 0.0
  %334 = vmatmul.mubr.f32.gmra.mrb[0].mxu0 %v214
  %v335 = vpop.f32.mrb[0].mxu0
  %v336 = vadd.f32 %v237, %v335
  %v337 = vpop.f32.mrb[0].mxu0
  %338 = vmatprep.mubr.f32.mxu0 0.0
  %339 = vmatmul.mubr.f32.gmra.mrb[0].mxu0 %v215
  %v340 = vpop.f32.mrb[0].mxu0
  %v341 = vadd.f32 %v237, %v340
  %v342 = vpop.f32.mrb[0].mxu0
  %343 = vdwg.mxu0
  %vm344 = vcmp.ge.f32.partialorder %v306, 0.0
  %vm345 = vcmp.ge.f32.partialorder %v311, 0.0
  %vm346 = vcmp.ge.f32.partialorder %v316, 0.0
  %vm347 = vcmp.ge.f32.partialorder %v321, 0.0
  %vm348 = vcmp.ge.f32.partialorder %v326, 0.0
  %vm349 = vcmp.ge.f32.partialorder %v331, 0.0
  %vm350 = vcmp.ge.f32.partialorder %v336, 0.0
  %vm351 = vcmp.ge.f32.partialorder %v341, 0.0
  %v352 = vmul.f32 %v306, 0.1
  %v353 = vmul.f32 %v311, 0.1
  %v354 = vmul.f32 %v316, 0.1
  %v355 = vmul.f32 %v321, 0.1
  %v356 = vmul.f32 %v326, 0.1
  %v357 = vmul.f32 %v331, 0.1
  %v358 = vmul.f32 %v336, 0.1
  %v359 = vmul.f32 %v341, 0.1
  %v360 = vsel %vm344, %v306, %v352
  %v361 = vsel %vm345, %v311, %v353
  %v362 = vsel %vm346, %v316, %v354
  %v363 = vsel %vm347, %v321, %v355
  %v364 = vsel %vm348, %v326, %v356
  %v365 = vsel %vm349, %v331, %v357
  %v366 = vsel %vm350, %v336, %v358
  %v367 = vsel %vm351, %v341, %v359
  %v368 = vld [vmem:[%s6] sm:$0xff]
  %v369 = vld [vmem:[%s6 + $0x8] sm:$0xff]
  %v370 = vld [vmem:[%s6 + $0x10] sm:$0xff]
  %v371 = vld [vmem:[%s6 + $0x18] sm:$0xff]
  %v372 = vld [vmem:[%s6 + $0x20] sm:$0xff]
  %v373 = vld [vmem:[%s6 + $0x28] sm:$0xff]
  %v374 = vld [vmem:[%s6 + $0x30] sm:$0xff]
  %v375 = vld [vmem:[%s6 + $0x38] sm:$0xff]
  %v376 = vld [vmem:[%s6 + $0x40] sm:$0xff]
  %v377 = vld [vmem:[%s6 + $0x48] sm:$0xff]
  %v378 = vld [vmem:[%s6 + $0x50] sm:$0xff]
  %v379 = vld [vmem:[%s6 + $0x58] sm:$0xff]
  %v380 = vld [vmem:[%s6 + $0x60] sm:$0xff]
  %v381 = vld [vmem:[%s6 + $0x68] sm:$0xff]
  %v382 = vld [vmem:[%s6 + $0x70] sm:$0xff]
  %v383 = vld [vmem:[%s6 + $0x78] sm:$0xff]
  %v384 = vld [vmem:[%s6 + $0x80] sm:$0xff]
  %v385 = vld [vmem:[%s6 + $0x88] sm:$0xff]
  %v386 = vld [vmem:[%s6 + $0x90] sm:$0xff]
  %v387 = vld [vmem:[%s6 + $0x98] sm:$0xff]
  %v388 = vld [vmem:[%s6 + $0xa0] sm:$0xff]
  %v389 = vld [vmem:[%s6 + $0xa8] sm:$0xff]
  %v390 = vld [vmem:[%s6 + $0xb0] sm:$0xff]
  %v391 = vld [vmem:[%s6 + $0xb8] sm:$0xff]
  %v392 = vld [vmem:[%s6 + $0xc0] sm:$0xff]
  %v393 = vld [vmem:[%s6 + $0xc8] sm:$0xff]
  %v394 = vld [vmem:[%s6 + $0xd0] sm:$0xff]
  %v395 = vld [vmem:[%s6 + $0xd8] sm:$0xff]
  %v396 = vld [vmem:[%s6 + $0xe0] sm:$0xff]
  %v397 = vld [vmem:[%s6 + $0xe8] sm:$0xff]
  %v398 = vld [vmem:[%s6 + $0xf0] sm:$0xff]
  %v399 = vld [vmem:[%s6 + $0xf8] sm:$0xff]
  %v400 = vld [vmem:[%s6 + $0x100] sm:$0xff]
  %v401 = vld [vmem:[%s6 + $0x108] sm:$0xff]
  %v402 = vld [vmem:[%s6 + $0x110] sm:$0xff]
  %v403 = vld [vmem:[%s6 + $0x118] sm:$0xff]
  %v404 = vld [vmem:[%s6 + $0x120] sm:$0xff]
  %v405 = vld [vmem:[%s6 + $0x128] sm:$0xff]
  %v406 = vld [vmem:[%s6 + $0x130] sm:$0xff]
  %v407 = vld [vmem:[%s6 + $0x138] sm:$0xff]
  %v408 = vld [vmem:[%s6 + $0x140] sm:$0xff]
  %v409 = vld [vmem:[%s6 + $0x148] sm:$0xff]
  %v410 = vld [vmem:[%s6 + $0x150] sm:$0xff]
  %v411 = vld [vmem:[%s6 + $0x158] sm:$0xff]
  %v412 = vld [vmem:[%s6 + $0x160] sm:$0xff]
  %v413 = vld [vmem:[%s6 + $0x168] sm:$0xff]
  %v414 = vld [vmem:[%s6 + $0x170] sm:$0xff]
  %v415 = vld [vmem:[%s6 + $0x178] sm:$0xff]
  %v416 = vld [vmem:[%s7] sm:$0xff]
  %v417 = vld [vmem:[%s7 + $0x8] sm:$0xff]
  %v418 = vld [vmem:[%s7 + $0x10] sm:$0xff]
  %v419 = vld [vmem:[%s7 + $0x18] sm:$0xff]
  %v420 = vld [vmem:[%s7 + $0x20] sm:$0xff]
  %v421 = vld [vmem:[%s7 + $0x28] sm:$0xff]
  %v422 = vld [vmem:[%s7 + $0x30] sm:$0xff]
  %v423 = vld [vmem:[%s7 + $0x38] sm:$0xff]
  %v424 = vld [vmem:[%s7 + $0x40] sm:$0xff]
  %v425 = vld [vmem:[%s7 + $0x48] sm:$0xff]
  %v426 = vld [vmem:[%s7 + $0x50] sm:$0xff]
  %v427 = vld [vmem:[%s7 + $0x58] sm:$0xff]
  %v428 = vld [vmem:[%s7 + $0x60] sm:$0xff]
  %v429 = vld [vmem:[%s7 + $0x68] sm:$0xff]
  %v430 = vld [vmem:[%s7 + $0x70] sm:$0xff]
  %v431 = vld [vmem:[%s7 + $0x78] sm:$0xff]
  %v432 = vld [vmem:[%s7 + $0x80] sm:$0xff]
  %v433 = vld [vmem:[%s7 + $0x88] sm:$0xff]
  %v434 = vld [vmem:[%s7 + $0x90] sm:$0xff]
  %v435 = vld [vmem:[%s7 + $0x98] sm:$0xff]
  %v436 = vld [vmem:[%s7 + $0xa0] sm:$0xff]
  %v437 = vld [vmem:[%s7 + $0xa8] sm:$0xff]
  %v438 = vld [vmem:[%s7 + $0xb0] sm:$0xff]
  %v439 = vld [vmem:[%s7 + $0xb8] sm:$0xff]
  %v440 = vld [vmem:[%s7 + $0xc0] sm:$0xff]
  %v441 = vld [vmem:[%s7 + $0xc8] sm:$0xff]
  %v442 = vld [vmem:[%s7 + $0xd0] sm:$0xff]
  %v443 = vld [vmem:[%s7 + $0xd8] sm:$0xff]
  %v444 = vld [vmem:[%s7 + $0xe0] sm:$0xff]
  %v445 = vld [vmem:[%s7 + $0xe8] sm:$0xff]
  %v446 = vld [vmem:[%s7 + $0xf0] sm:$0xff]
  %v447 = vld [vmem:[%s7 + $0xf8] sm:$0xff]
  %v448 = vld [vmem:[%s7 + $0x100] sm:$0xff]
  %v449 = vld [vmem:[%s7 + $0x108] sm:$0xff]
  %v450 = vld [vmem:[%s7 + $0x110] sm:$0xff]
  %v451 = vld [vmem:[%s7 + $0x118] sm:$0xff]
  %v452 = vld [vmem:[%s7 + $0x120] sm:$0xff]
  %v453 = vld [vmem:[%s7 + $0x128] sm:$0xff]
  %v454 = vld [vmem:[%s7 + $0x130] sm:$0xff]
  %v455 = vld [vmem:[%s7 + $0x138] sm:$0xff]
  %v456 = vld [vmem:[%s7 + $0x140] sm:$0xff]
  %v457 = vld [vmem:[%s7 + $0x148] sm:$0xff]
  %v458 = vld [vmem:[%s7 + $0x150] sm:$0xff]
  %v459 = vld [vmem:[%s7 + $0x158] sm:$0xff]
  %v460 = vld [vmem:[%s7 + $0x160] sm:$0xff]
  %v461 = vld [vmem:[%s7 + $0x168] sm:$0xff]
  %v462 = vld [vmem:[%s7 + $0x170] sm:$0xff]
  %v463 = vld [vmem:[%s7 + $0x178] sm:$0xff]
  %464 = vmatprep.subr.mxu0 %v417
  %465 = vmatpush1.msra.mxu0 %v416
  %466 = vmatprep.subr.mxu0 %v420
  %467 = vmatpush1.msra.mxu0 %v419
  %468 = vmatprep.subr.mxu0 %v423
  %469 = vmatpush1.msra.mxu0 %v422
  %470 = vmatprep.subr.mxu0 %v426
  %471 = vmatpush1.msra.mxu0 %v425
  %472 = vmatprep.subr.mxu0 %v429
  %473 = vmatpush1.msra.mxu0 %v428
  %474 = vmatprep.subr.mxu0 %v432
  %475 = vmatpush1.msra.mxu0 %v431
  %476 = vmatprep.subr.mxu0 %v435
  %477 = vmatpush1.msra.mxu0 %v434
  %478 = vmatprep.subr.mxu0 %v438
  %479 = vmatpush1.msra.mxu0 %v437
  %480 = vmatprep.subr.mxu0 %v441
  %481 = vmatpush1.msra.mxu0 %v440
  %482 = vmatprep.subr.mxu0 %v444
  %483 = vmatpush1.msra.mxu0 %v443
  %484 = vmatprep.subr.mxu0 %v447
  %485 = vmatpush1.msra.mxu0 %v446
  %486 = vmatprep.subr.mxu0 %v450
  %487 = vmatpush1.msra.mxu0 %v449
  %488 = vmatprep.subr.mxu0 %v453
  %489 = vmatpush1.msra.mxu0 %v452
  %490 = vmatprep.subr.mxu0 %v456
  %491 = vmatpush1.msra.mxu0 %v455
  %492 = vmatprep.subr.mxu0 %v459
  %493 = vmatpush1.msra.mxu0 %v458
  %494 = vmatprep.subr.mxu0 %v462
  %495 = vmatpush1.msra.mxu0 %v461
  %496 = vmatprep.subr.mxu0 0.0
  %497 = vmatpush1.msra.mxu0 0.0
  %498 = vmatprep.subr.mxu0 0.0
  %499 = vmatpush1.msra.mxu0 0.0
  %500 = vmatprep.subr.mxu0 0.0
  %501 = vmatpush1.msra.mxu0 0.0
  %502 = vmatprep.subr.mxu0 0.0
  %503 = vmatpush1.msra.mxu0 0.0
  %504 = vmatprep.subr.mxu0 0.0
  %505 = vmatpush1.msra.mxu0 0.0
  %506 = vmatprep.subr.mxu0 0.0
  %507 = vmatpush1.msra.mxu0 0.0
  %508 = vmatprep.subr.mxu0 0.0
  %509 = vmatpush1.msra.mxu0 0.0
  %510 = vmatprep.subr.mxu0 0.0
  %511 = vmatpush1.msra.mxu0 0.0
  %512 = vmatprep.subr.mxu0 0.0
  %513 = vmatpush1.msra.mxu0 0.0
  %514 = vmatprep.subr.mxu0 0.0
  %515 = vmatpush1.msra.mxu0 0.0
  %516 = vmatprep.subr.mxu0 0.0
  %517 = vmatpush1.msra.mxu0 0.0
  %518 = vmatprep.subr.mxu0 0.0
  %519 = vmatpush1.msra.mxu0 0.0
  %520 = vmatprep.subr.mxu0 0.0
  %521 = vmatpush1.msra.mxu0 0.0
  %522 = vmatprep.subr.mxu0 0.0
  %523 = vmatpush1.msra.mxu0 0.0
  %524 = vmatprep.subr.mxu0 0.0
  %525 = vmatpush1.msra.mxu0 0.0
  %526 = vmatprep.subr.mxu0 0.0
  %527 = vmatpush1.msra.mxu0 0.0
  %528 = vmatprep.mubr.f32.mxu0 0.0
  %529 = vmatmul.mubr.f32.gmra.mrb[0].mxu0 %v43
  %v530 = vpop.f32.mrb[0].mxu0
  %v531 = vadd.f32 0.0, %v530
  %v532 = vpop.f32.mrb[0].mxu0
  %v533 = vadd.f32 0.0, %v532
  %534 = vmatprep.mubr.f32.mxu0 0.0
  %535 = vmatmul.mubr.f32.gmra.mrb[0].mxu0 %v44
  %v536 = vpop.f32.mrb[0].mxu0
  %v537 = vadd.f32 0.0, %v536
  %v538 = vpop.f32.mrb[0].mxu0
  %v539 = vadd.f32 0.0, %v538
  %540 = vmatprep.mubr.f32.mxu0 0.0
  %541 = vmatmul.mubr.f32.gmra.mrb[0].mxu0 %v45
  %v542 = vpop.f32.mrb[0].mxu0
  %v543 = vadd.f32 0.0, %v542
  %v544 = vpop.f32.mrb[0].mxu0
  %v545 = vadd.f32 0.0, %v544
  %546 = vmatprep.mubr.f32.mxu0 0.0
  %547 = vmatmul.mubr.f32.gmra.mrb[0].mxu0 %v46
  %v548 = vpop.f32.mrb[0].mxu0
  %v549 = vadd.f32 0.0, %v548
  %v550 = vpop.f32.mrb[0].mxu0
  %v551 = vadd.f32 0.0, %v550
  %552 = vmatprep.mubr.f32.mxu0 0.0
  %553 = vmatmul.mubr.f32.gmra.mrb[0].mxu0 %v47
  %v554 = vpop.f32.mrb[0].mxu0
  %v555 = vadd.f32 0.0, %v554
  %v556 = vpop.f32.mrb[0].mxu0
  %v557 = vadd.f32 0.0, %v556
  %558 = vmatprep.mubr.f32.mxu0 0.0
  %559 = vmatmul.mubr.f32.gmra.mrb[0].mxu0 %v48
  %v560 = vpop.f32.mrb[0].mxu0
  %v561 = vadd.f32 0.0, %v560
  %v562 = vpop.f32.mrb[0].mxu0
  %v563 = vadd.f32 0.0, %v562
  %564 = vmatprep.mubr.f32.mxu0 0.0
  %565 = vmatmul.mubr.f32.gmra.mrb[0].mxu0 %v49
  %v566 = vpop.f32.mrb[0].mxu0
  %v567 = vadd.f32 0.0, %v566
  %v568 = vpop.f32.mrb[0].mxu0
  %v569 = vadd.f32 0.0, %v568
  %570 = vmatprep.mubr.f32.mxu0 0.0
  %571 = vmatmul.mubr.f32.gmra.mrb[0].mxu0 %v50
  %v572 = vpop.f32.mrb[0].mxu0
  %v573 = vadd.f32 0.0, %v572
  %v574 = vpop.f32.mrb[0].mxu0
  %v575 = vadd.f32 0.0, %v574
  %576 = vdwg.mxu0
  %577 = vmatprep.subr.mxu0 0.0
  %578 = vmatpush1.msra.mxu0 %v418
  %579 = vmatprep.subr.mxu0 0.0
  %580 = vmatpush1.msra.mxu0 %v421
  %581 = vmatprep.subr.mxu0 0.0
  %582 = vmatpush1.msra.mxu0 %v424
  %583 = vmatprep.subr.mxu0 0.0
  %584 = vmatpush1.msra.mxu0 %v427
  %585 = vmatprep.subr.mxu0 0.0
  %586 = vmatpush1.msra.mxu0 %v430
  %587 = vmatprep.subr.mxu0 0.0
  %588 = vmatpush1.msra.mxu0 %v433
  %589 = vmatprep.subr.mxu0 0.0
  %590 = vmatpush1.msra.mxu0 %v436
  %591 = vmatprep.subr.mxu0 0.0
  %592 = vmatpush1.msra.mxu0 %v439
  %593 = vmatprep.subr.mxu0 0.0
  %594 = vmatpush1.msra.mxu0 %v442
  %595 = vmatprep.subr.mxu0 0.0
  %596 = vmatpush1.msra.mxu0 %v445
  %597 = vmatprep.subr.mxu0 0.0
  %598 = vmatpush1.msra.mxu0 %v448
  %599 = vmatprep.subr.mxu0 0.0
  %600 = vmatpush1.msra.mxu0 %v451
  %601 = vmatprep.subr.mxu0 0.0
  %602 = vmatpush1.msra.mxu0 %v454
  %603 = vmatprep.subr.mxu0 0.0
  %604 = vmatpush1.msra.mxu0 %v457
  %605 = vmatprep.subr.mxu0 0.0
  %606 = vmatpush1.msra.mxu0 %v460
  %607 = vmatprep.subr.mxu0 0.0
  %608 = vmatpush1.msra.mxu0 %v463
  %609 = vmatprep.subr.mxu0 0.0
  %610 = vmatpush1.msra.mxu0 0.0
  %611 = vmatprep.subr.mxu0 0.0
  %612 = vmatpush1.msra.mxu0 0.0
  %613 = vmatprep.subr.mxu0 0.0
  %614 = vmatpush1.msra.mxu0 0.0
  %615 = vmatprep.subr.mxu0 0.0
  %616 = vmatpush1.msra.mxu0 0.0
  %617 = vmatprep.subr.mxu0 0.0
  %618 = vmatpush1.msra.mxu0 0.0
  %619 = vmatprep.subr.mxu0 0.0
  %620 = vmatpush1.msra.mxu0 0.0
  %621 = vmatprep.subr.mxu0 0.0
  %622 = vmatpush1.msra.mxu0 0.0
  %623 = vmatprep.subr.mxu0 0.0
  %624 = vmatpush1.msra.mxu0 0.0
  %625 = vmatprep.subr.mxu0 0.0
  %626 = vmatpush1.msra.mxu0 0.0
  %627 = vmatprep.subr.mxu0 0.0
  %628 = vmatpush1.msra.mxu0 0.0
  %629 = vmatprep.subr.mxu0 0.0
  %630 = vmatpush1.msra.mxu0 0.0
  %631 = vmatprep.subr.mxu0 0.0
  %632 = vmatpush1.msra.mxu0 0.0
  %633 = vmatprep.subr.mxu0 0.0
  %634 = vmatpush1.msra.mxu0 0.0
  %635 = vmatprep.subr.mxu0 0.0
  %636 = vmatpush1.msra.mxu0 0.0
  %637 = vmatprep.subr.mxu0 0.0
  %638 = vmatpush1.msra.mxu0 0.0
  %639 = vmatprep.subr.mxu0 0.0
  %640 = vmatpush1.msra.mxu0 0.0
  %641 = vmatprep.mubr.f32.mxu0 0.0
  %642 = vmatmul.mubr.f32.gmra.mrb[0].mxu0 %v43
  %v643 = vpop.f32.mrb[0].mxu0
  %v644 = vadd.f32 0.0, %v643
  %v645 = vpop.f32.mrb[0].mxu0
  %646 = vmatprep.mubr.f32.mxu0 0.0
  %647 = vmatmul.mubr.f32.gmra.mrb[0].mxu0 %v44
  %v648 = vpop.f32.mrb[0].mxu0
  %v649 = vadd.f32 0.0, %v648
  %v650 = vpop.f32.mrb[0].mxu0
  %651 = vmatprep.mubr.f32.mxu0 0.0
  %652 = vmatmul.mubr.f32.gmra.mrb[0].mxu0 %v45
  %v653 = vpop.f32.mrb[0].mxu0
  %v654 = vadd.f32 0.0, %v653
  %v655 = vpop.f32.mrb[0].mxu0
  %656 = vmatprep.mubr.f32.mxu0 0.0
  %657 = vmatmul.mubr.f32.gmra.mrb[0].mxu0 %v46
  %v658 = vpop.f32.mrb[0].mxu0
  %v659 = vadd.f32 0.0, %v658
  %v660 = vpop.f32.mrb[0].mxu0
  %661 = vmatprep.mubr.f32.mxu0 0.0
  %662 = vmatmul.mubr.f32.gmra.mrb[0].mxu0 %v47
  %v663 = vpop.f32.mrb[0].mxu0
  %v664 = vadd.f32 0.0, %v663
  %v665 = vpop.f32.mrb[0].mxu0
  %666 = vmatprep.mubr.f32.mxu0 0.0
  %667 = vmatmul.mubr.f32.gmra.mrb[0].mxu0 %v48
  %v668 = vpop.f32.mrb[0].mxu0
  %v669 = vadd.f32 0.0, %v668
  %v670 = vpop.f32.mrb[0].mxu0
  %671 = vmatprep.mubr.f32.mxu0 0.0
  %672 = vmatmul.mubr.f32.gmra.mrb[0].mxu0 %v49
  %v673 = vpop.f32.mrb[0].mxu0
  %v674 = vadd.f32 0.0, %v673
  %v675 = vpop.f32.mrb[0].mxu0
  %676 = vmatprep.mubr.f32.mxu0 0.0
  %677 = vmatmul.mubr.f32.gmra.mrb[0].mxu0 %v50
  %v678 = vpop.f32.mrb[0].mxu0
  %v679 = vadd.f32 0.0, %v678
  %v680 = vpop.f32.mrb[0].mxu0
  %681 = vdwg.mxu0
  %682 = vmatprep.subr.mxu0 %v369
  %683 = vmatpush1.msra.mxu0 %v368
  %684 = vmatprep.subr.mxu0 %v372
  %685 = vmatpush1.msra.mxu0 %v371
  %686 = vmatprep.subr.mxu0 %v375
  %687 = vmatpush1.msra.mxu0 %v374
  %688 = vmatprep.subr.mxu0 %v378
  %689 = vmatpush1.msra.mxu0 %v377
  %690 = vmatprep.subr.mxu0 %v381
  %691 = vmatpush1.msra.mxu0 %v380
  %692 = vmatprep.subr.mxu0 %v384
  %693 = vmatpush1.msra.mxu0 %v383
  %694 = vmatprep.subr.mxu0 %v387
  %695 = vmatpush1.msra.mxu0 %v386
  %696 = vmatprep.subr.mxu0 %v390
  %697 = vmatpush1.msra.mxu0 %v389
  %698 = vmatprep.subr.mxu0 %v393
  %699 = vmatpush1.msra.mxu0 %v392
  %700 = vmatprep.subr.mxu0 %v396
  %701 = vmatpush1.msra.mxu0 %v395
  %702 = vmatprep.subr.mxu0 %v399
  %703 = vmatpush1.msra.mxu0 %v398
  %704 = vmatprep.subr.mxu0 %v402
  %705 = vmatpush1.msra.mxu0 %v401
  %706 = vmatprep.subr.mxu0 %v405
  %707 = vmatpush1.msra.mxu0 %v404
  %708 = vmatprep.subr.mxu0 %v408
  %709 = vmatpush1.msra.mxu0 %v407
  %710 = vmatprep.subr.mxu0 %v411
  %711 = vmatpush1.msra.mxu0 %v410
  %712 = vmatprep.subr.mxu0 %v414
  %713 = vmatpush1.msra.mxu0 %v413
  %714 = vmatprep.subr.mxu0 0.0
  %715 = vmatpush1.msra.mxu0 0.0
  %716 = vmatprep.subr.mxu0 0.0
  %717 = vmatpush1.msra.mxu0 0.0
  %718 = vmatprep.subr.mxu0 0.0
  %719 = vmatpush1.msra.mxu0 0.0
  %720 = vmatprep.subr.mxu0 0.0
  %721 = vmatpush1.msra.mxu0 0.0
  %722 = vmatprep.subr.mxu0 0.0
  %723 = vmatpush1.msra.mxu0 0.0
  %724 = vmatprep.subr.mxu0 0.0
  %725 = vmatpush1.msra.mxu0 0.0
  %726 = vmatprep.subr.mxu0 0.0
  %727 = vmatpush1.msra.mxu0 0.0
  %728 = vmatprep.subr.mxu0 0.0
  %729 = vmatpush1.msra.mxu0 0.0
  %730 = vmatprep.subr.mxu0 0.0
  %731 = vmatpush1.msra.mxu0 0.0
  %732 = vmatprep.subr.mxu0 0.0
  %733 = vmatpush1.msra.mxu0 0.0
  %734 = vmatprep.subr.mxu0 0.0
  %735 = vmatpush1.msra.mxu0 0.0
  %736 = vmatprep.subr.mxu0 0.0
  %737 = vmatpush1.msra.mxu0 0.0
  %738 = vmatprep.subr.mxu0 0.0
  %739 = vmatpush1.msra.mxu0 0.0
  %740 = vmatprep.subr.mxu0 0.0
  %741 = vmatpush1.msra.mxu0 0.0
  %742 = vmatprep.subr.mxu0 0.0
  %743 = vmatpush1.msra.mxu0 0.0
  %744 = vmatprep.subr.mxu0 0.0
  %745 = vmatpush1.msra.mxu0 0.0
  %746 = vmatprep.mubr.f32.mxu0 0.0
  %747 = vmatmul.mubr.f32.gmra.mrb[0].mxu0 %v360
  %v748 = vpop.f32.mrb[0].mxu0
  %v749 = vadd.f32 %v531, %v748
  %v750 = vpop.f32.mrb[0].mxu0
  %v751 = vadd.f32 %v533, %v750
  %752 = vmatprep.mubr.f32.mxu0 0.0
  %753 = vmatmul.mubr.f32.gmra.mrb[0].mxu0 %v361
  %v754 = vpop.f32.mrb[0].mxu0
  %v755 = vadd.f32 %v537, %v754
  %v756 = vpop.f32.mrb[0].mxu0
  %v757 = vadd.f32 %v539, %v756
  %758 = vmatprep.mubr.f32.mxu0 0.0
  %759 = vmatmul.mubr.f32.gmra.mrb[0].mxu0 %v362
  %v760 = vpop.f32.mrb[0].mxu0
  %v761 = vadd.f32 %v543, %v760
  %v762 = vpop.f32.mrb[0].mxu0
  %v763 = vadd.f32 %v545, %v762
  %764 = vmatprep.mubr.f32.mxu0 0.0
  %765 = vmatmul.mubr.f32.gmra.mrb[0].mxu0 %v363
  %v766 = vpop.f32.mrb[0].mxu0
  %v767 = vadd.f32 %v549, %v766
  %v768 = vpop.f32.mrb[0].mxu0
  %v769 = vadd.f32 %v551, %v768
  %770 = vmatprep.mubr.f32.mxu0 0.0
  %771 = vmatmul.mubr.f32.gmra.mrb[0].mxu0 %v364
  %v772 = vpop.f32.mrb[0].mxu0
  %v773 = vadd.f32 %v555, %v772
  %v774 = vpop.f32.mrb[0].mxu0
  %v775 = vadd.f32 %v557, %v774
  %776 = vmatprep.mubr.f32.mxu0 0.0
  %777 = vmatmul.mubr.f32.gmra.mrb[0].mxu0 %v365
  %v778 = vpop.f32.mrb[0].mxu0
  %v779 = vadd.f32 %v561, %v778
  %v780 = vpop.f32.mrb[0].mxu0
  %v781 = vadd.f32 %v563, %v780
  %782 = vmatprep.mubr.f32.mxu0 0.0
  %783 = vmatmul.mubr.f32.gmra.mrb[0].mxu0 %v366
  %v784 = vpop.f32.mrb[0].mxu0
  %v785 = vadd.f32 %v567, %v784
  %v786 = vpop.f32.mrb[0].mxu0
  %v787 = vadd.f32 %v569, %v786
  %788 = vmatprep.mubr.f32.mxu0 0.0
  %789 = vmatmul.mubr.f32.gmra.mrb[0].mxu0 %v367
  %v790 = vpop.f32.mrb[0].mxu0
  %v791 = vadd.f32 %v573, %v790
  %v792 = vpop.f32.mrb[0].mxu0
  %v793 = vadd.f32 %v575, %v792
  %794 = vdwg.mxu0
  %795 = vmatprep.subr.mxu0 0.0
  %796 = vmatpush1.msra.mxu0 %v370
  %797 = vmatprep.subr.mxu0 0.0
  %798 = vmatpush1.msra.mxu0 %v373
  %799 = vmatprep.subr.mxu0 0.0
  %800 = vmatpush1.msra.mxu0 %v376
  %801 = vmatprep.subr.mxu0 0.0
  %802 = vmatpush1.msra.mxu0 %v379
  %803 = vmatprep.subr.mxu0 0.0
  %804 = vmatpush1.msra.mxu0 %v382
  %805 = vmatprep.subr.mxu0 0.0
  %806 = vmatpush1.msra.mxu0 %v385
  %807 = vmatprep.subr.mxu0 0.0
  %808 = vmatpush1.msra.mxu0 %v388
  %809 = vmatprep.subr.mxu0 0.0
  %810 = vmatpush1.msra.mxu0 %v391
  %811 = vmatprep.subr.mxu0 0.0
  %812 = vmatpush1.msra.mxu0 %v394
  %813 = vmatprep.subr.mxu0 0.0
  %814 = vmatpush1.msra.mxu0 %v397
  %815 = vmatprep.subr.mxu0 0.0
  %816 = vmatpush1.msra.mxu0 %v400
  %817 = vmatprep.subr.mxu0 0.0
  %818 = vmatpush1.msra.mxu0 %v403
  %819 = vmatprep.subr.mxu0 0.0
  %820 = vmatpush1.msra.mxu0 %v406
  %821 = vmatprep.subr.mxu0 0.0
  %822 = vmatpush1.msra.mxu0 %v409
  %823 = vmatprep.subr.mxu0 0.0
  %824 = vmatpush1.msra.mxu0 %v412
  %825 = vmatprep.subr.mxu0 0.0
  %826 = vmatpush1.msra.mxu0 %v415
  %827 = vmatprep.subr.mxu0 0.0
  %828 = vmatpush1.msra.mxu0 0.0
  %829 = vmatprep.subr.mxu0 0.0
  %830 = vmatpush1.msra.mxu0 0.0
  %831 = vmatprep.subr.mxu0 0.0
  %832 = vmatpush1.msra.mxu0 0.0
  %833 = vmatprep.subr.mxu0 0.0
  %834 = vmatpush1.msra.mxu0 0.0
  %835 = vmatprep.subr.mxu0 0.0
  %836 = vmatpush1.msra.mxu0 0.0
  %837 = vmatprep.subr.mxu0 0.0
  %838 = vmatpush1.msra.mxu0 0.0
  %839 = vmatprep.subr.mxu0 0.0
  %840 = vmatpush1.msra.mxu0 0.0
  %841 = vmatprep.subr.mxu0 0.0
  %842 = vmatpush1.msra.mxu0 0.0
  %843 = vmatprep.subr.mxu0 0.0
  %844 = vmatpush1.msra.mxu0 0.0
  %845 = vmatprep.subr.mxu0 0.0
  %846 = vmatpush1.msra.mxu0 0.0
  %847 = vmatprep.subr.mxu0 0.0
  %848 = vmatpush1.msra.mxu0 0.0
  %849 = vmatprep.subr.mxu0 0.0
  %850 = vmatpush1.msra.mxu0 0.0
  %851 = vmatprep.subr.mxu0 0.0
  %852 = vmatpush1.msra.mxu0 0.0
  %853 = vmatprep.subr.mxu0 0.0
  %854 = vmatpush1.msra.mxu0 0.0
  %855 = vmatprep.subr.mxu0 0.0
  %856 = vmatpush1.msra.mxu0 0.0
  %857 = vmatprep.subr.mxu0 0.0
  %858 = vmatpush1.msra.mxu0 0.0
  %859 = vmatprep.mubr.f32.mxu0 0.0
  %860 = vmatmul.mubr.f32.gmra.mrb[0].mxu0 %v360
  %v861 = vpop.f32.mrb[0].mxu0
  %v862 = vadd.f32 %v644, %v861
  %v863 = vpop.f32.mrb[0].mxu0
  %864 = vmatprep.mubr.f32.mxu0 0.0
  %865 = vmatmul.mubr.f32.gmra.mrb[0].mxu0 %v361
  %v866 = vpop.f32.mrb[0].mxu0
  %v867 = vadd.f32 %v649, %v866
  %v868 = vpop.f32.mrb[0].mxu0
  %869 = vmatprep.mubr.f32.mxu0 0.0
  %870 = vmatmul.mubr.f32.gmra.mrb[0].mxu0 %v362
  %v871 = vpop.f32.mrb[0].mxu0
  %v872 = vadd.f32 %v654, %v871
  %v873 = vpop.f32.mrb[0].mxu0
  %874 = vmatprep.mubr.f32.mxu0 0.0
  %875 = vmatmul.mubr.f32.gmra.mrb[0].mxu0 %v363
  %v876 = vpop.f32.mrb[0].mxu0
  %v877 = vadd.f32 %v659, %v876
  %v878 = vpop.f32.mrb[0].mxu0
  %879 = vmatprep.mubr.f32.mxu0 0.0
  %880 = vmatmul.mubr.f32.gmra.mrb[0].mxu0 %v364
  %v881 = vpop.f32.mrb[0].mxu0
  %v882 = vadd.f32 %v664, %v881
  %v883 = vpop.f32.mrb[0].mxu0
  %884 = vmatprep.mubr.f32.mxu0 0.0
  %885 = vmatmul.mubr.f32.gmra.mrb[0].mxu0 %v365
  %v886 = vpop.f32.mrb[0].mxu0
  %v887 = vadd.f32 %v669, %v886
  %v888 = vpop.f32.mrb[0].mxu0
  %889 = vmatprep.mubr.f32.mxu0 0.0
  %890 = vmatmul.mubr.f32.gmra.mrb[0].mxu0 %v366
  %v891 = vpop.f32.mrb[0].mxu0
  %v892 = vadd.f32 %v674, %v891
  %v893 = vpop.f32.mrb[0].mxu0
  %894 = vmatprep.mubr.f32.mxu0 0.0
  %895 = vmatmul.mubr.f32.gmra.mrb[0].mxu0 %v367
  %v896 = vpop.f32.mrb[0].mxu0
  %v897 = vadd.f32 %v679, %v896
  %v898 = vpop.f32.mrb[0].mxu0
  %899 = vdwg.mxu0
  %v900 = vld [vmem:[%s8] sm:$0x7]
  %v902 = vlaneseq
  %v903 = vshrl.u32 %v902, 7
  %v904 = vsub.s32 0, %v903
  %v905 = vrot.slane %v900, %v904
  %v906 = vlaneseq
  %v907 = vshrl.u32 %v906, 7
  %v908 = vsub.s32 1, %v907
  %v909 = vrot.slane %v900, %v908
  %v910 = vlaneseq
  %v911 = vshrl.u32 %v910, 7
  %v912 = vsub.s32 2, %v911
  %v913 = vrot.slane %v900, %v912
  %v917 = vadd.f32 %v749, %v905
  %v918 = vadd.f32 %v751, %v909
  %v919 = vadd.f32 %v862, %v913
  %v920 = vadd.f32 %v755, %v905
  %v921 = vadd.f32 %v757, %v909
  %v922 = vadd.f32 %v867, %v913
  %v923 = vadd.f32 %v761, %v905
  %v924 = vadd.f32 %v763, %v909
  %v925 = vadd.f32 %v872, %v913
  %v926 = vadd.f32 %v767, %v905
  %v927 = vadd.f32 %v769, %v909
  %v928 = vadd.f32 %v877, %v913
  %v929 = vadd.f32 %v773, %v905
  %v930 = vadd.f32 %v775, %v909
  %v931 = vadd.f32 %v882, %v913
  %v932 = vadd.f32 %v779, %v905
  %v933 = vadd.f32 %v781, %v909
  %v934 = vadd.f32 %v887, %v913
  %v935 = vadd.f32 %v785, %v905
  %v936 = vadd.f32 %v787, %v909
  %v937 = vadd.f32 %v892, %v913
  %v938 = vadd.f32 %v791, %v905
  %v939 = vadd.f32 %v793, %v909
  %v940 = vadd.f32 %v897, %v913
  %vm941 = vcmp.ge.f32.partialorder %v919, 0.0
  %vm942 = vcmp.ge.f32.partialorder %v922, 0.0
  %vm943 = vcmp.ge.f32.partialorder %v925, 0.0
  %vm944 = vcmp.ge.f32.partialorder %v928, 0.0
  %vm945 = vcmp.ge.f32.partialorder %v931, 0.0
  %vm946 = vcmp.ge.f32.partialorder %v934, 0.0
  %vm947 = vcmp.ge.f32.partialorder %v937, 0.0
  %vm948 = vcmp.ge.f32.partialorder %v940, 0.0
  %v949 = vmul.f32 %v919, 0.1
  %v950 = vmul.f32 %v922, 0.1
  %v951 = vmul.f32 %v925, 0.1
  %v952 = vmul.f32 %v928, 0.1
  %v953 = vmul.f32 %v931, 0.1
  %v954 = vmul.f32 %v934, 0.1
  %v955 = vmul.f32 %v937, 0.1
  %v956 = vmul.f32 %v940, 0.1
  %v957 = vsel %vm941, %v919, %v949
  %v958 = vsel %vm942, %v922, %v950
  %v959 = vsel %vm943, %v925, %v951
  %v960 = vsel %vm944, %v928, %v952
  %v961 = vsel %vm945, %v931, %v953
  %v962 = vsel %vm946, %v934, %v954
  %v963 = vsel %vm947, %v937, %v955
  %v964 = vsel %vm948, %v940, %v956
  %v965 = vld [vmem:[%s9] sm:$0xff]
  %v966 = vld [vmem:[%s9 + $0x8] sm:$0xff]
  %v967 = vld [vmem:[%s9 + $0x10] sm:$0xff]
  %v968 = vld [vmem:[%s9 + $0x18] sm:$0xff]
  %v969 = vld [vmem:[%s9 + $0x20] sm:$0xff]
  %v970 = vld [vmem:[%s9 + $0x28] sm:$0xff]
  %v971 = vld [vmem:[%s9 + $0x30] sm:$0xff]
  %v972 = vld [vmem:[%s9 + $0x38] sm:$0xff]
  %v973 = vld [vmem:[%s9 + $0x40] sm:$0xff]
  %v974 = vld [vmem:[%s9 + $0x48] sm:$0xff]
  %v975 = vld [vmem:[%s9 + $0x50] sm:$0xff]
  %v976 = vld [vmem:[%s9 + $0x58] sm:$0xff]
  %v977 = vld [vmem:[%s9 + $0x60] sm:$0xff]
  %v978 = vld [vmem:[%s9 + $0x68] sm:$0xff]
  %v979 = vld [vmem:[%s9 + $0x70] sm:$0xff]
  %v980 = vld [vmem:[%s9 + $0x78] sm:$0xff]
  %981 = vmatprep.subr.mxu0 0.0
  %982 = vmatpush1.msra.mxu0 %v965
  %983 = vmatprep.subr.mxu0 0.0
  %984 = vmatpush1.msra.mxu0 %v966
  %985 = vmatprep.subr.mxu0 0.0
  %986 = vmatpush1.msra.mxu0 %v967
  %987 = vmatprep.subr.mxu0 0.0
  %988 = vmatpush1.msra.mxu0 %v968
  %989 = vmatprep.subr.mxu0 0.0
  %990 = vmatpush1.msra.mxu0 %v969
  %991 = vmatprep.subr.mxu0 0.0
  %992 = vmatpush1.msra.mxu0 %v970
  %993 = vmatprep.subr.mxu0 0.0
  %994 = vmatpush1.msra.mxu0 %v971
  %995 = vmatprep.subr.mxu0 0.0
  %996 = vmatpush1.msra.mxu0 %v972
  %997 = vmatprep.subr.mxu0 0.0
  %998 = vmatpush1.msra.mxu0 %v973
  %999 = vmatprep.subr.mxu0 0.0
  %1000 = vmatpush1.msra.mxu0 %v974
  %1001 = vmatprep.subr.mxu0 0.0
  %1002 = vmatpush1.msra.mxu0 %v975
  %1003 = vmatprep.subr.mxu0 0.0
  %1004 = vmatpush1.msra.mxu0 %v976
  %1005 = vmatprep.subr.mxu0 0.0
  %1006 = vmatpush1.msra.mxu0 %v977
  %1007 = vmatprep.subr.mxu0 0.0
  %1008 = vmatpush1.msra.mxu0 %v978
  %1009 = vmatprep.subr.mxu0 0.0
  %1010 = vmatpush1.msra.mxu0 %v979
  %1011 = vmatprep.subr.mxu0 0.0
  %1012 = vmatpush1.msra.mxu0 %v980
  %1013 = vmatprep.subr.mxu0 0.0
  %1014 = vmatpush1.msra.mxu0 0.0
  %1015 = vmatprep.subr.mxu0 0.0
  %1016 = vmatpush1.msra.mxu0 0.0
  %1017 = vmatprep.subr.mxu0 0.0
  %1018 = vmatpush1.msra.mxu0 0.0
  %1019 = vmatprep.subr.mxu0 0.0
  %1020 = vmatpush1.msra.mxu0 0.0
  %1021 = vmatprep.subr.mxu0 0.0
  %1022 = vmatpush1.msra.mxu0 0.0
  %1023 = vmatprep.subr.mxu0 0.0
  %1024 = vmatpush1.msra.mxu0 0.0
  %1025 = vmatprep.subr.mxu0 0.0
  %1026 = vmatpush1.msra.mxu0 0.0
  %1027 = vmatprep.subr.mxu0 0.0
  %1028 = vmatpush1.msra.mxu0 0.0
  %1029 = vmatprep.subr.mxu0 0.0
  %1030 = vmatpush1.msra.mxu0 0.0
  %1031 = vmatprep.subr.mxu0 0.0
  %1032 = vmatpush1.msra.mxu0 0.0
  %1033 = vmatprep.subr.mxu0 0.0
  %1034 = vmatpush1.msra.mxu0 0.0
  %1035 = vmatprep.subr.mxu0 0.0
  %1036 = vmatpush1.msra.mxu0 0.0
  %1037 = vmatprep.subr.mxu0 0.0
  %1038 = vmatpush1.msra.mxu0 0.0
  %1039 = vmatprep.subr.mxu0 0.0
  %1040 = vmatpush1.msra.mxu0 0.0
  %1041 = vmatprep.subr.mxu0 0.0
  %1042 = vmatpush1.msra.mxu0 0.0
  %1043 = vmatprep.subr.mxu0 0.0
  %1044 = vmatpush1.msra.mxu0 0.0
  %1045 = vmatprep.mubr.f32.mxu0 0.0
  %1046 = vmatmul.mubr.f32.gmra.mrb[0].mxu0 %v957
  %v1047 = vpop.f32.mrb[0].mxu0
  %v1048 = vadd.f32 0.0, %v1047
  %v1049 = vpop.f32.mrb[0].mxu0
  %1050 = vmatprep.mubr.f32.mxu0 0.0
  %1051 = vmatmul.mubr.f32.gmra.mrb[0].mxu0 %v958
  %v1052 = vpop.f32.mrb[0].mxu0
  %v1053 = vadd.f32 0.0, %v1052
  %v1054 = vpop.f32.mrb[0].mxu0
  %1055 = vmatprep.mubr.f32.mxu0 0.0
  %1056 = vmatmul.mubr.f32.gmra.mrb[0].mxu0 %v959
  %v1057 = vpop.f32.mrb[0].mxu0
  %v1058 = vadd.f32 0.0, %v1057
  %v1059 = vpop.f32.mrb[0].mxu0
  %1060 = vmatprep.mubr.f32.mxu0 0.0
  %1061 = vmatmul.mubr.f32.gmra.mrb[0].mxu0 %v960
  %v1062 = vpop.f32.mrb[0].mxu0
  %v1063 = vadd.f32 0.0, %v1062
  %v1064 = vpop.f32.mrb[0].mxu0
  %1065 = vmatprep.mubr.f32.mxu0 0.0
  %1066 = vmatmul.mubr.f32.gmra.mrb[0].mxu0 %v961
  %v1067 = vpop.f32.mrb[0].mxu0
  %v1068 = vadd.f32 0.0, %v1067
  %v1069 = vpop.f32.mrb[0].mxu0
  %1070 = vmatprep.mubr.f32.mxu0 0.0
  %1071 = vmatmul.mubr.f32.gmra.mrb[0].mxu0 %v962
  %v1072 = vpop.f32.mrb[0].mxu0
  %v1073 = vadd.f32 0.0, %v1072
  %v1074 = vpop.f32.mrb[0].mxu0
  %1075 = vmatprep.mubr.f32.mxu0 0.0
  %1076 = vmatmul.mubr.f32.gmra.mrb[0].mxu0 %v963
  %v1077 = vpop.f32.mrb[0].mxu0
  %v1078 = vadd.f32 0.0, %v1077
  %v1079 = vpop.f32.mrb[0].mxu0
  %1080 = vmatprep.mubr.f32.mxu0 0.0
  %1081 = vmatmul.mubr.f32.gmra.mrb[0].mxu0 %v964
  %v1082 = vpop.f32.mrb[0].mxu0
  %v1083 = vadd.f32 0.0, %v1082
  %v1084 = vpop.f32.mrb[0].mxu0
  %1085 = vdwg.mxu0
  %1086 = vst [vmem:[%s10] sm:$0xff] %v208
  %1087 = vst [vmem:[%s10 + $0x30] sm:$0xff] %v209
  %1088 = vst [vmem:[%s10 + $0x60] sm:$0xff] %v210
  %1089 = vst [vmem:[%s10 + $0x90] sm:$0xff] %v211
  %1090 = vst [vmem:[%s10 + $0xc0] sm:$0xff] %v212
  %1091 = vst [vmem:[%s10 + $0xf0] sm:$0xff] %v213
  %1092 = vst [vmem:[%s10 + $0x120] sm:$0xff] %v214
  %1093 = vst [vmem:[%s10 + $0x150] sm:$0xff] %v215
  %1094 = vst [vmem:[%s10 + $0x8] sm:$0xff] %v917
  %1095 = vst [vmem:[%s10 + $0x10] sm:$0xff] %v918
  %1096 = vst [vmem:[%s10 + $0x18] sm:$0xff] %v919
  %1097 = vst [vmem:[%s10 + $0x38] sm:$0xff] %v920
  %1098 = vst [vmem:[%s10 + $0x40] sm:$0xff] %v921
  %1099 = vst [vmem:[%s10 + $0x48] sm:$0xff] %v922
  %1100 = vst [vmem:[%s10 + $0x68] sm:$0xff] %v923
  %1101 = vst [vmem:[%s10 + $0x70] sm:$0xff] %v924
  %1102 = vst [vmem:[%s10 + $0x78] sm:$0xff] %v925
  %1103 = vst [vmem:[%s10 + $0x98] sm:$0xff] %v926
  %1104 = vst [vmem:[%s10 + $0xa0] sm:$0xff] %v927
  %1105 = vst [vmem:[%s10 + $0xa8] sm:$0xff] %v928
  %1106 = vst [vmem:[%s10 + $0xc8] sm:$0xff] %v929
  %1107 = vst [vmem:[%s10 + $0xd0] sm:$0xff] %v930
  %1108 = vst [vmem:[%s10 + $0xd8] sm:$0xff] %v931
  %1109 = vst [vmem:[%s10 + $0xf8] sm:$0xff] %v932
  %1110 = vst [vmem:[%s10 + $0x100] sm:$0xff] %v933
  %1111 = vst [vmem:[%s10 + $0x108] sm:$0xff] %v934
  %1112 = vst [vmem:[%s10 + $0x128] sm:$0xff] %v935
  %1113 = vst [vmem:[%s10 + $0x130] sm:$0xff] %v936
  %1114 = vst [vmem:[%s10 + $0x138] sm:$0xff] %v937
  %1115 = vst [vmem:[%s10 + $0x158] sm:$0xff] %v938
  %1116 = vst [vmem:[%s10 + $0x160] sm:$0xff] %v939
  %1117 = vst [vmem:[%s10 + $0x168] sm:$0xff] %v940
  %1118 = vst [vmem:[%s10 + $0x20] sm:$0xff] %v957
  %1119 = vst [vmem:[%s10 + $0x50] sm:$0xff] %v958
  %1120 = vst [vmem:[%s10 + $0x80] sm:$0xff] %v959
  %1121 = vst [vmem:[%s10 + $0xb0] sm:$0xff] %v960
  %1122 = vst [vmem:[%s10 + $0xe0] sm:$0xff] %v961
  %1123 = vst [vmem:[%s10 + $0x110] sm:$0xff] %v962
  %1124 = vst [vmem:[%s10 + $0x140] sm:$0xff] %v963
  %1125 = vst [vmem:[%s10 + $0x170] sm:$0xff] %v964
  %1126 = vst [vmem:[%s10 + $0x28] sm:$0xff] %v1048
  %1127 = vst [vmem:[%s10 + $0x58] sm:$0xff] %v1053
  %1128 = vst [vmem:[%s10 + $0x88] sm:$0xff] %v1058
  %1129 = vst [vmem:[%s10 + $0xb8] sm:$0xff] %v1063
  %1130 = vst [vmem:[%s10 + $0xe8] sm:$0xff] %v1068
  %1131 = vst [vmem:[%s10 + $0x118] sm:$0xff] %v1073
  %1132 = vst [vmem:[%s10 + $0x148] sm:$0xff] %v1078
  %1133 = vst [vmem:[%s10 + $0x178] sm:$0xff] %v1083
  // Predicated region
  $region42: #{rnn_classifier2stream_forward.1} parent=0 // pred_check
    _
  $region43: #{rnn_classifier2stream_forward.1} parent=0 // pred_check_branch
    %1135 = sbr.rel (0) target = $region45
  $region44: #{rnn_classifier2stream_forward.1} parent=0 // pred_region
    _
  $region45: #{rnn_classifier2stream_forward.1} parent=0 // pred_fallthru
    _
  // Predicated region
  $region46: #{rnn_classifier2stream_forward.1} parent=0 // pred_check
    _
  $region47: #{rnn_classifier2stream_forward.1} parent=0 // pred_check_branch
    %1137 = sbr.rel (0) target = $region49
  $region48: #{rnn_classifier2stream_forward.1} parent=0 // pred_region
    _
  $region49: #{rnn_classifier2stream_forward.1} parent=0 // pred_fallthru
    _

</llo_original>
